<compile_context>
chip_gen: v5e
topology: v5e:2x2
jax: 0.10.0
libtpu: 0.0.40
codegen_flags: <defaults>
</compile_context>

<pallas_src>
import functools
import math

import numpy as np
import jax
import jax.numpy as jnp
from jax.experimental import pallas as pl
from jax.experimental.pallas import tpu as pltpu

# Synthetic stand-ins for managan's letter_code / structures / get_residue_len.
LETTER_CODE = ("A", "G", "L")
RES_LEN = {"A": 4, "G": 3, "L": 7}  # = len(struct.atoms) - 1 in the original


def _round_up(a, b):
    return (a + b - 1) // b * b


def _choose_lane_tile(n, lane_tile):
    """Lane tile (multiple of 128); prefer >=2 grid steps for v7x's 2 TCs."""
    lane_tile = max(128, _round_up(lane_tile, 128))
    if n <= 128:
        return 128
    if n <= 2 * lane_tile:
        return _round_up(math.ceil(n / 2), 128)   # -> exactly 2 grid steps
    return lane_tile


def _letter_matmul_kernel(w_ref, b_ref, x_ref, o_ref):
    # w: (amino_dim, K)  b: (amino_dim, 1)  x: (K, tn)  o: (amino_dim, tn)
    acc = jnp.dot(w_ref[...], x_ref[...], preferred_element_type=jnp.float32)
    o_ref[...] = (acc + b_ref[...]).astype(o_ref.dtype)


def lin_atom_to_amino(x, weights, biases, *, seq, residue_indices,
                      inds, atom_dim, amino_dim,
                      compute_dtype=jnp.bfloat16, out_dtype=jnp.float32,
                      lane_tile=2048, pallas_min_lanes=128):
    """Pallas-backed forward. seq / residue_indices are static Python metadata."""
    batch = x.shape[0]
    atoms = x.shape[1]
    ind_dims = x.shape[3:]
    assert ind_dims == (3,) * inds and x.shape[2] == atom_dim
    prod_ind = int(np.prod(ind_dims)) if ind_dims else 1
    M = batch * prod_ind
    n_res = len(seq)

    # --- ONE global layout pass (shared by all letters) ---------------------
    # (batch, atoms, atom_dim, *ind) -> (atoms*atom_dim, batch*prod_ind), bf16
    perm = (1, 2, 0) + tuple(range(3, 3 + inds))
    x_flat = jnp.transpose(x.astype(compute_dtype), perm).reshape(atoms * atom_dim, M)

    # --- group residues by letter (static metadata) --------------------------
    groups = {}
    for i, letter in enumerate(seq):
        groups.setdefault(letter, []).append(i)
    single_group = len(groups) == 1

    out = None
    if not single_group:
        out = jnp.zeros((batch, n_res, amino_dim, prod_ind), dtype=out_dtype)

    for letter, r_ids in groups.items():
        r = RES_LEN[letter]
        K = r * atom_dim
        n_L = len(r_ids)
        N = n_L * M

        # Channel-major gather: rows ordered (k-major over residues), so the
        # reshape directly yields (K, n_L*M) with NO per-letter transpose.
        starts = np.asarray([residue_indices[i] * atom_dim for i in r_ids])   # (n_L,)
        chan_idx = (np.arange(K)[:, None] + starts[None, :]).reshape(-1)      # (K*n_L,)
        x_l = jnp.take(x_flat, jnp.asarray(chan_idx), axis=0).reshape(K, N)

        w = weights[letter].astype(compute_dtype)                    # (amino_dim, K)
        b = biases[letter].reshape(amino_dim, 1).astype(jnp.float32)

        if N < pallas_min_lanes:
            # Small-problem fallback: XLA dot beats kernel launch overhead.
            y = (jnp.dot(w, x_l, preferred_element_type=jnp.float32) + b).astype(out_dtype)
        else:
            tn = _choose_lane_tile(N, lane_tile)
            n_pad = _round_up(N, tn)
            if n_pad != N:
                x_l = jnp.pad(x_l, ((0, 0), (0, n_pad - N)))
            y = pl.pallas_call(
                _letter_matmul_kernel,
                out_shape=jax.ShapeDtypeStruct((amino_dim, n_pad), out_dtype),
                grid_spec=pltpu.PrefetchScalarGridSpec(
                    num_scalar_prefetch=0,
                    grid=(n_pad // tn,),
                    in_specs=[
                        # Weight / bias blocks identical across the grid -> resident.
                        pl.BlockSpec((amino_dim, K), lambda j: (0, 0)),
                        pl.BlockSpec((amino_dim, 1), lambda j: (0, 0)),
                        pl.BlockSpec((K, tn), lambda j: (0, j)),
                    ],
                    out_specs=pl.BlockSpec((amino_dim, tn), lambda j: (0, j)),
                ),
                compiler_params=pltpu.CompilerParams(
                    dimension_semantics=("parallel",)),
            )(w, b, x_l)
            y = y[:, :N]

        y = y.reshape(amino_dim, n_L, batch, prod_ind)
        y = jnp.transpose(y, (2, 1, 0, 3))          # (batch, n_L, amino_dim, prod_ind)

        if single_group:
            out = y                                  # residue order already correct
        else:
            out = out.at[:, jnp.asarray(r_ids)].set(y)   # direct scatter, no concat/argsort

    return out.reshape((batch, n_res, amino_dim) + ind_dims)


def lin_atom_to_amino_ref(x, weights, biases, *, seq, residue_indices,
                          inds, atom_dim, amino_dim, compute_dtype=None):
    """Pure-JAX reference mirroring the PyTorch forward.

    If compute_dtype is given, inputs are rounded to it (then upcast) so the
    reference matches the kernel's compute precision exactly.
    """
    batch = x.shape[0]
    ind_dims = x.shape[3:]
    outs = []
    for i, letter in enumerate(seq):
        r = RES_LEN[letter]
        s = residue_indices[i]
        xs = x[:, s:s + r].reshape((batch, r * atom_dim) + ind_dims)
        w = weights[letter]
        if compute_dtype is not None:
            xs = xs.astype(compute_dtype).astype(jnp.float32)
            w = w.astype(compute_dtype).astype(jnp.float32)
        y = jnp.einsum("oc,bc...->bo...", w, xs, precision="highest") \
            + biases[letter].reshape((1, amino_dim) + (1,) * inds)
        outs.append(y)
    return jnp.stack(outs, axis=1)


if __name__ == "__main__":
    inds = 1
    atom_dim = 4
    amino_dim = 8
    batch = 8
    seq = "AGL" * 8            # 24 residues; each letter appears 8x

    # residue start offsets into the atom axis (cumulative residue lengths)
    residue_indices = []
    off = 0
    for letter in seq:
        residue_indices.append(off)
        off += RES_LEN[letter]
    atoms = off                 # 112
    residue_indices = tuple(residue_indices)

    key = jax.random.PRNGKey(0)
    kx, kw = jax.random.split(key)
    x = jax.random.normal(kx, (batch, atoms, atom_dim) + (3,) * inds, dtype=jnp.float32)

    # Deterministic per-letter TensLinear parameters.
    # TODO(synk): TensLinear's exact init/bias convention isn't shown; we use a plain
    #             linear over the channel dim with a bias (the real module may drop the
    #             bias for inds > 0 for equivariance) — kernel and reference are consistent.
    weights, biases = {}, {}
    for j, letter in enumerate(LETTER_CODE):
        kl = jax.random.fold_in(kw, j)
        fan_in = RES_LEN[letter] * atom_dim
        weights[letter] = jax.random.normal(kl, (amino_dim, fan_in), dtype=jnp.float32) / jnp.sqrt(fan_in)
        biases[letter] = 0.1 * jax.random.normal(jax.random.fold_in(kl, 1), (amino_dim,), dtype=jnp.float32)

    fwd = jax.jit(functools.partial(
        lin_atom_to_amino, seq=seq, residue_indices=residue_indices,
        inds=inds, atom_dim=atom_dim, amino_dim=amino_dim,
        compute_dtype=jnp.bfloat16))

    out = fwd(x, weights, biases)
    out = jax.block_until_ready(out)
    assert out.shape == (batch, len(seq), amino_dim) + (3,) * inds, out.shape

    # Tight check against a reference using identical bf16-rounded inputs
    # (bf16 products are exact in f32; only summation order differs).
    ref_bf16 = lin_atom_to_amino_ref(x, weights, biases, seq=seq,
                                     residue_indices=residue_indices,
                                     inds=inds, atom_dim=atom_dim, amino_dim=amino_dim,
                                     compute_dtype=jnp.bfloat16)
    err = float(jnp.max(jnp.abs(out - ref_bf16)))
    assert jnp.allclose(out, ref_bf16, atol=1e-4, rtol=1e-4), err

    # Loose sanity check against the full-f32 reference (bf16 input rounding only).
    ref_f32 = lin_atom_to_amino_ref(x, weights, biases, seq=seq,
                                    residue_indices=residue_indices,
                                    inds=inds, atom_dim=atom_dim, amino_dim=amino_dim)
    err32 = float(jnp.max(jnp.abs(out - ref_f32)))
    assert jnp.allclose(out, ref_f32, atol=5e-2, rtol=5e-2), err32

    print("KERNEL_OK")
</pallas_src>

<mosaic_0001>
module attributes {stable_mosaic.version = 11 : i64} {
  func.func @_letter_matmul_kernel(%arg0: i32, %arg1: memref<8x16xbf16, #tpu.memory_space<vmem>>, %arg2: memref<8x1xf32, #tpu.memory_space<vmem>>, %arg3: memref<16x128xbf16, #tpu.memory_space<vmem>>, %arg4: memref<8x128xf32, #tpu.memory_space<vmem>>) attributes {dimension_semantics = [#tpu.dimension_semantics<parallel>], iteration_bounds = array<i64: 2>, scalar_prefetch = 0 : i64, scratch_operands = 0 : i64, tpu.core_type = #tpu.core_type<tc>, window_params = [{pipeline_mode = #tpu.pipeline_mode<synchronous>, transform_indices = @transform_0, window_bounds = array<i64: 8, 16>}, {pipeline_mode = #tpu.pipeline_mode<synchronous>, transform_indices = @transform_1, window_bounds = array<i64: 8, 1>}, {transform_indices = @transform_2, window_bounds = array<i64: 16, 128>}, {transform_indices = @transform_3, window_bounds = array<i64: 8, 128>}]} {
    %c0 = arith.constant 0 : index
    %c0_0 = arith.constant 0 : index
    %0 = vector.load %arg1[%c0, %c0_0] : memref<8x16xbf16, #tpu.memory_space<vmem>>, vector<8x16xbf16>
    %c0_1 = arith.constant 0 : index
    %c0_2 = arith.constant 0 : index
    %1 = vector.load %arg3[%c0_1, %c0_2] : memref<16x128xbf16, #tpu.memory_space<vmem>>, vector<16x128xbf16>
    %cst = arith.constant dense<0.000000e+00> : vector<8x128xf32>
    %2 = tpu.matmul %0, %1, %cst {dimension_numbers = #tpu.dot_dimension_numbers<[1], [0], [0], [1], [0, 0, 1, 1], [], []>} : vector<8x16xbf16>, vector<16x128xbf16>, vector<8x128xf32> -> vector<8x128xf32>
    %c0_3 = arith.constant 0 : index
    %c0_4 = arith.constant 0 : index
    %3 = vector.load %arg2[%c0_3, %c0_4] : memref<8x1xf32, #tpu.memory_space<vmem>>, vector<8x1xf32>
    %4 = vector.broadcast %3 : vector<8x1xf32> to vector<8x128xf32>
    %5 = arith.addf %2, %4 : vector<8x128xf32>
    %c0_5 = arith.constant 0 : index
    %c0_6 = arith.constant 0 : index
    %6 = vector.load %arg4[%c0_5, %c0_6] : memref<8x128xf32, #tpu.memory_space<vmem>>, vector<8x128xf32>
    tpu.vector_store %arg4[%c0_5, %c0_6], %5 {strides = array<i32>} : memref<8x128xf32, #tpu.memory_space<vmem>>, vector<8x128xf32>,
    return
  }
  func.func @transform_0(%arg0: i32) -> (i32, i32) {
    %c0_i32 = arith.constant 0 : i32
    %c0_i32_0 = arith.constant 0 : i32
    %c0_i32_1 = arith.constant 0 : i32
    return %c0_i32, %c0_i32_0 : i32, i32
  }
  func.func @transform_1(%arg0: i32) -> (i32, i32) {
    %c0_i32 = arith.constant 0 : i32
    %c0_i32_0 = arith.constant 0 : i32
    %c0_i32_1 = arith.constant 0 : i32
    return %c0_i32, %c0_i32_0 : i32, i32
  }
  func.func @transform_2(%arg0: i32) -> (i32, i32) {
    %c0_i32 = arith.constant 0 : i32
    %c0_i32_0 = arith.constant 0 : i32
    return %c0_i32, %arg0 : i32, i32
  }
  func.func @transform_3(%arg0: i32) -> (i32, i32) {
    %c0_i32 = arith.constant 0 : i32
    %c0_i32_0 = arith.constant 0 : i32
    return %c0_i32, %arg0 : i32, i32
  }
}

module attributes {stable_mosaic.version = 11 : i64} {
  func.func @_letter_matmul_kernel(%arg0: i32, %arg1: memref<8x12xbf16, #tpu.memory_space<vmem>>, %arg2: memref<8x1xf32, #tpu.memory_space<vmem>>, %arg3: memref<12x128xbf16, #tpu.memory_space<vmem>>, %arg4: memref<8x128xf32, #tpu.memory_space<vmem>>) attributes {dimension_semantics = [#tpu.dimension_semantics<parallel>], iteration_bounds = array<i64: 2>, scalar_prefetch = 0 : i64, scratch_operands = 0 : i64, tpu.core_type = #tpu.core_type<tc>, window_params = [{pipeline_mode = #tpu.pipeline_mode<synchronous>, transform_indices = @transform_0, window_bounds = array<i64: 8, 12>}, {pipeline_mode = #tpu.pipeline_mode<synchronous>, transform_indices = @transform_1, window_bounds = array<i64: 8, 1>}, {transform_indices = @transform_2, window_bounds = array<i64: 12, 128>}, {transform_indices = @transform_3, window_bounds = array<i64: 8, 128>}]} {
    %c0 = arith.constant 0 : index
    %c0_0 = arith.constant 0 : index
    %0 = vector.load %arg1[%c0, %c0_0] : memref<8x12xbf16, #tpu.memory_space<vmem>>, vector<8x12xbf16>
    %c0_1 = arith.constant 0 : index
    %c0_2 = arith.constant 0 : index
    %1 = vector.load %arg3[%c0_1, %c0_2] : memref<12x128xbf16, #tpu.memory_space<vmem>>, vector<12x128xbf16>
    %cst = arith.constant dense<0.000000e+00> : vector<8x128xf32>
    %2 = tpu.matmul %0, %1, %cst {dimension_numbers = #tpu.dot_dimension_numbers<[1], [0], [0], [1], [0, 0, 1, 1], [], []>} : vector<8x12xbf16>, vector<12x128xbf16>, vector<8x128xf32> -> vector<8x128xf32>
    %c0_3 = arith.constant 0 : index
    %c0_4 = arith.constant 0 : index
    %3 = vector.load %arg2[%c0_3, %c0_4] : memref<8x1xf32, #tpu.memory_space<vmem>>, vector<8x1xf32>
    %4 = vector.broadcast %3 : vector<8x1xf32> to vector<8x128xf32>
    %5 = arith.addf %2, %4 : vector<8x128xf32>
    %c0_5 = arith.constant 0 : index
    %c0_6 = arith.constant 0 : index
    %6 = vector.load %arg4[%c0_5, %c0_6] : memref<8x128xf32, #tpu.memory_space<vmem>>, vector<8x128xf32>
    tpu.vector_store %arg4[%c0_5, %c0_6], %5 {strides = array<i32>} : memref<8x128xf32, #tpu.memory_space<vmem>>, vector<8x128xf32>,
    return
  }
  func.func @transform_0(%arg0: i32) -> (i32, i32) {
    %c0_i32 = arith.constant 0 : i32
    %c0_i32_0 = arith.constant 0 : i32
    %c0_i32_1 = arith.constant 0 : i32
    return %c0_i32, %c0_i32_0 : i32, i32
  }
  func.func @transform_1(%arg0: i32) -> (i32, i32) {
    %c0_i32 = arith.constant 0 : i32
    %c0_i32_0 = arith.constant 0 : i32
    %c0_i32_1 = arith.constant 0 : i32
    return %c0_i32, %c0_i32_0 : i32, i32
  }
  func.func @transform_2(%arg0: i32) -> (i32, i32) {
    %c0_i32 = arith.constant 0 : i32
    %c0_i32_0 = arith.constant 0 : i32
    return %c0_i32, %arg0 : i32, i32
  }
  func.func @transform_3(%arg0: i32) -> (i32, i32) {
    %c0_i32 = arith.constant 0 : i32
    %c0_i32_0 = arith.constant 0 : i32
    return %c0_i32, %arg0 : i32, i32
  }
}

module attributes {stable_mosaic.version = 11 : i64} {
  func.func @_letter_matmul_kernel(%arg0: i32, %arg1: memref<8x28xbf16, #tpu.memory_space<vmem>>, %arg2: memref<8x1xf32, #tpu.memory_space<vmem>>, %arg3: memref<28x128xbf16, #tpu.memory_space<vmem>>, %arg4: memref<8x128xf32, #tpu.memory_space<vmem>>) attributes {dimension_semantics = [#tpu.dimension_semantics<parallel>], iteration_bounds = array<i64: 2>, scalar_prefetch = 0 : i64, scratch_operands = 0 : i64, tpu.core_type = #tpu.core_type<tc>, window_params = [{pipeline_mode = #tpu.pipeline_mode<synchronous>, transform_indices = @transform_0, window_bounds = array<i64: 8, 28>}, {pipeline_mode = #tpu.pipeline_mode<synchronous>, transform_indices = @transform_1, window_bounds = array<i64: 8, 1>}, {transform_indices = @transform_2, window_bounds = array<i64: 28, 128>}, {transform_indices = @transform_3, window_bounds = array<i64: 8, 128>}]} {
    %c0 = arith.constant 0 : index
    %c0_0 = arith.constant 0 : index
    %0 = vector.load %arg1[%c0, %c0_0] : memref<8x28xbf16, #tpu.memory_space<vmem>>, vector<8x28xbf16>
    %c0_1 = arith.constant 0 : index
    %c0_2 = arith.constant 0 : index
    %1 = vector.load %arg3[%c0_1, %c0_2] : memref<28x128xbf16, #tpu.memory_space<vmem>>, vector<28x128xbf16>
    %cst = arith.constant dense<0.000000e+00> : vector<8x128xf32>
    %2 = tpu.matmul %0, %1, %cst {dimension_numbers = #tpu.dot_dimension_numbers<[1], [0], [0], [1], [0, 0, 1, 1], [], []>} : vector<8x28xbf16>, vector<28x128xbf16>, vector<8x128xf32> -> vector<8x128xf32>
    %c0_3 = arith.constant 0 : index
    %c0_4 = arith.constant 0 : index
    %3 = vector.load %arg2[%c0_3, %c0_4] : memref<8x1xf32, #tpu.memory_space<vmem>>, vector<8x1xf32>
    %4 = vector.broadcast %3 : vector<8x1xf32> to vector<8x128xf32>
    %5 = arith.addf %2, %4 : vector<8x128xf32>
    %c0_5 = arith.constant 0 : index
    %c0_6 = arith.constant 0 : index
    %6 = vector.load %arg4[%c0_5, %c0_6] : memref<8x128xf32, #tpu.memory_space<vmem>>, vector<8x128xf32>
    tpu.vector_store %arg4[%c0_5, %c0_6], %5 {strides = array<i32>} : memref<8x128xf32, #tpu.memory_space<vmem>>, vector<8x128xf32>,
    return
  }
  func.func @transform_0(%arg0: i32) -> (i32, i32) {
    %c0_i32 = arith.constant 0 : i32
    %c0_i32_0 = arith.constant 0 : i32
    %c0_i32_1 = arith.constant 0 : i32
    return %c0_i32, %c0_i32_0 : i32, i32
  }
  func.func @transform_1(%arg0: i32) -> (i32, i32) {
    %c0_i32 = arith.constant 0 : i32
    %c0_i32_0 = arith.constant 0 : i32
    %c0_i32_1 = arith.constant 0 : i32
    return %c0_i32, %c0_i32_0 : i32, i32
  }
  func.func @transform_2(%arg0: i32) -> (i32, i32) {
    %c0_i32 = arith.constant 0 : i32
    %c0_i32_0 = arith.constant 0 : i32
    return %c0_i32, %arg0 : i32, i32
  }
  func.func @transform_3(%arg0: i32) -> (i32, i32) {
    %c0_i32 = arith.constant 0 : i32
    %c0_i32_0 = arith.constant 0 : i32
    return %c0_i32, %arg0 : i32, i32
  }
}

</mosaic_0001>

<llo_original>
// kernel: lin_atom_to_amino.3
$region0: #{lin_atom_to_amino.3}
  #allocation0 [shape = 'u32[]', space=smem, size = 0x4, offset = 0x4, fixed_abs, tag = 'smem constant byte address 0x4 - core index']
  #allocation1 [shape = 'u32[72,128]{1,0:T(1,128)}', space=vmem, size = 0x9000, scoped, tag = 'internal scratch']
  %s0 = inlined_call_operand.vmem [shape: bf16[8,16], index: 0, kind: input, shape index: {}]
  %s1 = inlined_call_operand.vmem [shape: f32[8,1], index: 1, kind: input, shape index: {}]
  %s2 = inlined_call_operand.vmem [shape: bf16[16,256], index: 2, kind: input, shape index: {}]
  %s3 = inlined_call_operand.vmem [shape: f32[8,256], index: 3, kind: output, shape index: {}]
  %s4 = sld [smem:[#allocation0]]
  $region86: #{lin_atom_to_amino.3} parent=0
    _
  %s6 = ssub.s32 1, %s4
  %s7 = scalar_select 0, %s6, %s4
  $region1: #{lin_atom_to_amino.3} parent=0
    #allocation2 [shape = 'u8[8192]{0}', space=vmem, size = 0x2000, scoped, tag = 'input window, operand 2']
    loop: start=0, step=1, limit=4
    $region2: #{lin_atom_to_amino.3} parent=1 // loop_pre_header
      _
    $region3: #{lin_atom_to_amino.3} parent=1 // loop_header
      %s9 = sphi 0, %s13
      %p10 = scmp.ge.s32.totalorder %s9, 4
      %s17 = sphi 0, %s17
      %s19 = sphi 0, %s17
      %s20 = sphi 0, %s19
      %s34 = sphi 0, %s20
      %s38 = sphi 0, %s38
      %s40 = sphi 0, %s38
      %s41 = sphi 0, %s40
      %s55 = sphi 0, %s41
      %s61 = sphi 0, %s63
      %s64 = sphi 0, %s61
      %s65 = sphi 0, %s64
      %s81 = sphi 0, %s65
      %s87 = sphi 0, %s89
      %s90 = sphi 0, %s87
      %s91 = sphi 0, %s90
      %s107 = sphi 0, %s91
    $region4: #{lin_atom_to_amino.3} parent=1 // loop_header_branch
      %12 = sbr.rel (%p10) target = $region8
    $region5: #{lin_atom_to_amino.3} parent=1 // loop_body
      %s14 = ssub.s32 %s9, 1
      %s15 = ssub.s32 %s9, 2
      %s16 = sadd.s32 %s9, 1
      %s18 = sadd.s32 %s17, 1
      %p21 = scmp.eq.s32.totalorder %s9, 1
      %p22 = scmp.ne.s32.totalorder %s17, %s19
      %p23 = scmp.eq.s32.totalorder %s9, 0
      %p24 = por %p22, %p23
      %p25 = scmp.ne.s32.totalorder %s17, %s19
      %p26 = scmp.eq.s32.totalorder %s14, 1
      %p27 = por %p25, %p26
      %p28 = scmp.ne.s32.totalorder %s19, %s20
      %p29 = scmp.eq.s32.totalorder %s14, 0
      %p30 = por %p28, %p29
      %p31 = scmp.ne.s32.totalorder %s19, %s20
      %p32 = scmp.eq.s32.totalorder %s15, 1
      %p33 = por %p31, %p32
      %p35 = scmp.ne.s32.totalorder %s20, %s34
      %p36 = scmp.eq.s32.totalorder %s15, 0
      %p37 = por %p35, %p36
      %s39 = sadd.s32 %s38, 1
      %p42 = scmp.eq.s32.totalorder %s9, 1
      %p43 = scmp.ne.s32.totalorder %s38, %s40
      %p44 = scmp.eq.s32.totalorder %s9, 0
      %p45 = por %p43, %p44
      %p46 = scmp.ne.s32.totalorder %s38, %s40
      %p47 = scmp.eq.s32.totalorder %s14, 1
      %p48 = por %p46, %p47
      %p49 = scmp.ne.s32.totalorder %s40, %s41
      %p50 = scmp.eq.s32.totalorder %s14, 0
      %p51 = por %p49, %p50
      %p52 = scmp.ne.s32.totalorder %s40, %s41
      %p53 = scmp.eq.s32.totalorder %s15, 1
      %p54 = por %p52, %p53
      %p56 = scmp.ne.s32.totalorder %s41, %s55
      %p57 = scmp.eq.s32.totalorder %s15, 0
      %p58 = por %p56, %p57
      %s59 = ssub.s32 %s9, %s16
      %p60 = scmp.eq.s32.totalorder %s59, 0
      %s62 = sadd.s32 %s61, 1
      %s63 = scalar_select %p60, %s61, %s62
      %p66 = pneg %p60
      %p67 = scmp.eq.s32.totalorder %s9, 1
      %p68 = por %p66, %p67
      %p69 = scmp.ne.s32.totalorder %s61, %s64
      %p70 = scmp.eq.s32.totalorder %s9, 0
      %p71 = por %p69, %p70
      %p72 = scmp.ne.s32.totalorder %s61, %s64
      %p73 = scmp.eq.s32.totalorder %s14, 1
      %p74 = por %p72, %p73
      %p75 = scmp.ne.s32.totalorder %s64, %s65
      %p76 = scmp.eq.s32.totalorder %s14, 0
      %p77 = por %p75, %p76
      %p78 = scmp.ne.s32.totalorder %s64, %s65
      %p79 = scmp.eq.s32.totalorder %s15, 1
      %p80 = por %p78, %p79
      %p82 = scmp.ne.s32.totalorder %s65, %s81
      %p83 = scmp.eq.s32.totalorder %s15, 0
      %p84 = por %p82, %p83
      %s85 = ssub.s32 %s9, %s16
      %p86 = scmp.eq.s32.totalorder %s85, 0
      %s88 = sadd.s32 %s87, 1
      %s89 = scalar_select %p86, %s87, %s88
      %p92 = pneg %p86
      %p93 = scmp.eq.s32.totalorder %s9, 1
      %p94 = por %p92, %p93
      %p95 = scmp.ne.s32.totalorder %s87, %s90
      %p96 = scmp.eq.s32.totalorder %s9, 0
      %p97 = por %p95, %p96
      %p98 = scmp.ne.s32.totalorder %s87, %s90
      %p99 = scmp.eq.s32.totalorder %s14, 1
      %p100 = por %p98, %p99
      %p101 = scmp.ne.s32.totalorder %s90, %s91
      %p102 = scmp.eq.s32.totalorder %s14, 0
      %p103 = por %p101, %p102
      %p104 = scmp.ne.s32.totalorder %s90, %s91
      %p105 = scmp.eq.s32.totalorder %s15, 1
      %p106 = por %p104, %p105
      %p108 = scmp.ne.s32.totalorder %s91, %s107
      %p109 = scmp.eq.s32.totalorder %s15, 0
      %p110 = por %p108, %p109
      %p111 = scmp.le.s32.totalorder 1, %s9
      %p112 = scmp.lt.s32.totalorder %s9, 3
      %p113 = pnand %p111, %p112
      %p114 = pneg %p113
      // Predicated region
      $region9: #{lin_atom_to_amino.3} parent=5 // pred_check
        _
      $region10: #{lin_atom_to_amino.3} parent=5 // pred_check_branch
        %116 = sbr.rel (%p113) target = $region12
      $region11: #{lin_atom_to_amino.3} parent=5 // pred_region
        %s117 = ssub.s32 %s9, 1
        // Predicated region
        $region13: #{lin_atom_to_amino.3} parent=11 // pred_check
          %p118 = pneg %p30
        $region14: #{lin_atom_to_amino.3} parent=11 // pred_check_branch
          %120 = sbr.rel (%p118) target = $region16
        $region15: #{lin_atom_to_amino.3} parent=11 // pred_region
          _
        $region16: #{lin_atom_to_amino.3} parent=11 // pred_fallthru
          _
        // Predicated region
        $region17: #{lin_atom_to_amino.3} parent=11 // pred_check
          %p121 = pneg %p51
        $region18: #{lin_atom_to_amino.3} parent=11 // pred_check_branch
          %123 = sbr.rel (%p121) target = $region20
        $region19: #{lin_atom_to_amino.3} parent=11 // pred_region
          _
        $region20: #{lin_atom_to_amino.3} parent=11 // pred_fallthru
          _
      $region12: #{lin_atom_to_amino.3} parent=5 // pred_fallthru
        _
      %p124 = scmp.lt.s32.totalorder %s9, 2
      // Predicated region
      $region21: #{lin_atom_to_amino.3} parent=5 // pred_check
        %p125 = pneg %p124
      $region22: #{lin_atom_to_amino.3} parent=5 // pred_check_branch
        %127 = sbr.rel (%p125) target = $region24
      $region23: #{lin_atom_to_amino.3} parent=5 // pred_region
        // Predicated region
        $region25: #{lin_atom_to_amino.3} parent=23 // pred_check
          %p128 = pneg %p71
        $region26: #{lin_atom_to_amino.3} parent=23 // pred_check_branch
          %130 = sbr.rel (%p128) target = $region28
        $region27: #{lin_atom_to_amino.3} parent=23 // pred_region
          %s131 = sand.u32 %s61, 1
          %s132 = sand.u32 %s61, 1
          %s133 = smul.addr %s132, 8
          %s134 = scalar_lea.vmem [#allocation2], %s133
          %s135 = smul.addr %s9, 4
          %s136 = scalar_lea.vmem %s2, %s135
          // Predicated region
          $region29: #{lin_atom_to_amino.3} parent=27 // pred_check
            _
          $region30: #{lin_atom_to_amino.3} parent=27 // pred_check_branch
            %138 = sbr.rel (0) target = $region32
          $region31: #{lin_atom_to_amino.3} parent=27 // pred_region
            // Predicated region
            $region33: #{lin_atom_to_amino.3} parent=31 // pred_check
              _
            $region34: #{lin_atom_to_amino.3} parent=31 // pred_check_branch
              %140 = sbr.rel target = $region36
            $region35: #{lin_atom_to_amino.3} parent=31 // pred_region
              // Predicated region
              $region48: #{lin_atom_to_amino.3} parent=35 // pred_check
                _
              $region49: #{lin_atom_to_amino.3} parent=35 // pred_check_branch
                %158 = sbr.rel (0) target = $region51
              $region50: #{lin_atom_to_amino.3} parent=35 // pred_region
                loop: start=0, step=1, limit=1
                $region52: #{lin_atom_to_amino.3} parent=50 // loop_pre_header
                  _
                $region53: #{lin_atom_to_amino.3} parent=50 // loop_header
                  %s160 = sphi 0, %s164
                  %p161 = scmp.ge.s32.totalorder %s160, 1
                  %s165 = sphi %s136, %s136
                  %s166 = sphi %s134, %s134
                $region54: #{lin_atom_to_amino.3} parent=50 // loop_header_branch
                  %163 = sbr.rel (%p161) target = $region58
                $region55: #{lin_atom_to_amino.3} parent=50 // loop_body
                  _
                $region56: #{lin_atom_to_amino.3} parent=50 // loop_footer
                  %s164 = sadd.s32 1, %s160
                $region57: #{lin_atom_to_amino.3} parent=50 // loop_footer_branch
                  %159 = sbr.rel target = $region53
                $region58: #{lin_atom_to_amino.3} parent=50 // loop_exit
                  _
                %s168 = ssub.s32 16, 1
                loop: start=0, step=1, limit=1
                $region59: #{lin_atom_to_amino.3} parent=50 // loop_pre_header
                  _
                $region60: #{lin_atom_to_amino.3} parent=50 // loop_header
                  %s170 = sphi 0, %s174
                  %p171 = scmp.ge.s32.totalorder %s170, 1
                  %s175 = sphi %s136, %s136
                  %s176 = sphi %s134, %s134
                $region61: #{lin_atom_to_amino.3} parent=50 // loop_header_branch
                  %173 = sbr.rel (%p171) target = $region65
                $region62: #{lin_atom_to_amino.3} parent=50 // loop_body
                  %v177 = vld [vmem:[%s175] sm:%s168]
                  %178 = vst [vmem:[%s176] sm:%s168] %v177
                  %v179 = vld [vmem:[%s175 + $0x8] sm:%s168]
                  %180 = vst [vmem:[%s176 + $0x4] sm:%s168] %v179
                $region63: #{lin_atom_to_amino.3} parent=50 // loop_footer
                  %s174 = sadd.s32 1, %s170
                $region64: #{lin_atom_to_amino.3} parent=50 // loop_footer_branch
                  %169 = sbr.rel target = $region60
                $region65: #{lin_atom_to_amino.3} parent=50 // loop_exit
                  _
              $region51: #{lin_atom_to_amino.3} parent=35 // pred_fallthru
                _
            $region36: #{lin_atom_to_amino.3} parent=31 // pred_fallthru
              _
            // Predicated region
            $region37: #{lin_atom_to_amino.3} parent=31 // pred_check
              _
            $region38: #{lin_atom_to_amino.3} parent=31 // pred_check_branch
              %142 = sbr.rel (0) target = $region40
            $region39: #{lin_atom_to_amino.3} parent=31 // pred_region
              %s144 = ssub.s32 16, 1
              loop: start=0, step=1, limit=1
              $region41: #{lin_atom_to_amino.3} parent=39 // loop_pre_header
                _
              $region42: #{lin_atom_to_amino.3} parent=39 // loop_header
                %s146 = sphi 0, %s150
                %p147 = scmp.ge.s32.totalorder %s146, 1
                %s151 = sphi %s136, %s136
                %s152 = sphi %s134, %s134
              $region43: #{lin_atom_to_amino.3} parent=39 // loop_header_branch
                %149 = sbr.rel (%p147) target = $region47
              $region44: #{lin_atom_to_amino.3} parent=39 // loop_body
                %v153 = vld [vmem:[%s151] sm:%s144]
                %154 = vst [vmem:[%s152] sm:%s144] %v153
                %v155 = vld [vmem:[%s151 + $0x8] sm:%s144]
                %156 = vst [vmem:[%s152 + $0x4] sm:%s144] %v155
              $region45: #{lin_atom_to_amino.3} parent=39 // loop_footer
                %s150 = sadd.s32 1, %s146
              $region46: #{lin_atom_to_amino.3} parent=39 // loop_footer_branch
                %145 = sbr.rel target = $region42
              $region47: #{lin_atom_to_amino.3} parent=39 // loop_exit
                _
            $region40: #{lin_atom_to_amino.3} parent=31 // pred_fallthru
              _
          $region32: #{lin_atom_to_amino.3} parent=27 // pred_fallthru
            _
          %181 = vnop
        $region28: #{lin_atom_to_amino.3} parent=23 // pred_fallthru
          _
      $region24: #{lin_atom_to_amino.3} parent=5 // pred_fallthru
        _
      %p182 = scmp.le.s32.totalorder 1, %s9
      %p183 = scmp.lt.s32.totalorder %s9, 3
      %p184 = pnand %p182, %p183
      %p185 = pneg %p184
      // Predicated region
      $region66: #{lin_atom_to_amino.3} parent=5 // pred_check
        _
      $region67: #{lin_atom_to_amino.3} parent=5 // pred_check_branch
        %187 = sbr.rel (%p184) target = $region69
      $region68: #{lin_atom_to_amino.3} parent=5 // pred_region
        %s188 = ssub.s32 %s9, 1
        %s189 = sand.u32 %s64, 1
        %s190 = sand.u32 %s64, 1
        %s191 = smul.addr %s190, 8
        %s192 = scalar_lea.vmem [#allocation2], %s191
        // Predicated region
        $region70: #{lin_atom_to_amino.3} parent=68 // pred_check
          %p193 = pneg %p77
        $region71: #{lin_atom_to_amino.3} parent=68 // pred_check_branch
          %195 = sbr.rel (%p193) target = $region73
        $region72: #{lin_atom_to_amino.3} parent=68 // pred_region
          _
        $region73: #{lin_atom_to_amino.3} parent=68 // pred_fallthru
          _
        %p196 = pneg %p30
        %p197 = pneg %p27
        %p198 = pneg %p51
        %p199 = pneg %p48
        %s200 = sand.u32 %s64, 1
        %s201 = sand.u32 %s64, 1
        %s202 = smul.addr %s201, 8
        %s203 = scalar_lea.vmem [#allocation2], %s202
        %p204 = pneg %p77
        %p205 = pneg %p74
        %p206 = pneg %p103
        %p207 = pneg %p100
        %p208 = scmp.lt.s32.totalorder %s14, 1
        %s209 = scalar_select %p208, %s14, 1
        %s210 = smul.addr %s209, 8
        %s211 = scalar_lea.vmem %s3, %s210
        %p212 = scmp.lt.s32.totalorder %s14, 1
        %s213 = scalar_select %p212, %s14, 1
        %s214 = smul.addr %s213, 8
        %s215 = scalar_lea.vmem %s3, %s214
        %v217 = vld [vmem:[%s0] sm:$0xf]
        %v218 = vld [vmem:[%s192] sm:$0xf]
        %v219 = vld [vmem:[%s192 + $0x4] sm:$0xf]
        %v220 = vld [vmem:[%s1] sm:$0xff]
        %222 = vset.pattern.permute.xlu0 0
        %223 = vperm.xlu0 %222, %v220
        %v224 = vpop.permute.xlu0 %223
        %v228 = vunpack.c.l.b16 %v218
        %v229 = vunpack.c.l.b16 %v219
        %v230 = vpack.c.b16 %v229, %v228
        %vm232 = vcmask 130048
        %v234 = vsel %vm232, %v217, 0
        %236 = vmatpush.bf16.msra.mxu0 0
        %237 = vmatpush.bf16.msra.mxu0 0
        %238 = vmatpush.bf16.msra.mxu0 0
        %239 = vmatpush.bf16.msra.mxu0 0
        %240 = vmatpush.bf16.msra.mxu0 0
        %241 = vmatpush.bf16.msra.mxu0 0
        %242 = vmatpush.bf16.msra.mxu0 0
        %243 = vmatpush.bf16.msra.mxu0 %v230
        %244 = vmatmul.bf16.gmra.mxu0 %v234
        %v245 = vpop.f32.mrf.mxu0
        %v246 = vadd.f32 %v224, %v245
        %v247 = vpop.f32.mrf.mxu0
        %248 = vdwg.mxu0
        %249 = vst [vmem:[%s215] sm:$0xff] %v246
        %p250 = scmp.lt.s32.totalorder %s14, 1
        %s251 = scalar_select %p250, %s14, 1
        %s252 = smul.addr %s251, 8
        %s253 = scalar_lea.vmem %s3, %s252
        // Predicated region
        $region74: #{lin_atom_to_amino.3} parent=68 // pred_check
          %p254 = pneg %p100
        $region75: #{lin_atom_to_amino.3} parent=68 // pred_check_branch
          %256 = sbr.rel (%p254) target = $region77
        $region76: #{lin_atom_to_amino.3} parent=68 // pred_region
          _
        $region77: #{lin_atom_to_amino.3} parent=68 // pred_fallthru
          _
      $region69: #{lin_atom_to_amino.3} parent=5 // pred_fallthru
        _
      %p257 = scmp.le.s32.totalorder 2, %s9
      // Predicated region
      $region78: #{lin_atom_to_amino.3} parent=5 // pred_check
        %p258 = pneg %p257
      $region79: #{lin_atom_to_amino.3} parent=5 // pred_check_branch
        %260 = sbr.rel (%p258) target = $region81
      $region80: #{lin_atom_to_amino.3} parent=5 // pred_region
        %s261 = ssub.s32 %s9, 2
        // Predicated region
        $region82: #{lin_atom_to_amino.3} parent=80 // pred_check
          %p262 = pneg %p106
        $region83: #{lin_atom_to_amino.3} parent=80 // pred_check_branch
          %264 = sbr.rel (%p262) target = $region85
        $region84: #{lin_atom_to_amino.3} parent=80 // pred_region
          %p265 = scmp.lt.s32.totalorder %s15, 1
          %s266 = scalar_select %p265, %s15, 1
          %s267 = smul.addr %s266, 8
          %s268 = scalar_lea.vmem %s3, %s267
        $region85: #{lin_atom_to_amino.3} parent=80 // pred_fallthru
          _
      $region81: #{lin_atom_to_amino.3} parent=5 // pred_fallthru
        _
    $region6: #{lin_atom_to_amino.3} parent=1 // loop_footer
      %s13 = sadd.s32 1, %s9
    $region7: #{lin_atom_to_amino.3} parent=1 // loop_footer_branch
      %8 = sbr.rel target = $region3
    $region8: #{lin_atom_to_amino.3} parent=1 // loop_exit
      _

// kernel: lin_atom_to_amino.4
$region0: #{lin_atom_to_amino.4}
  #allocation0 [shape = 'u32[]', space=smem, size = 0x4, offset = 0x4, fixed_abs, tag = 'smem constant byte address 0x4 - core index']
  #allocation1 [shape = 'u32[72,128]{1,0:T(1,128)}', space=vmem, size = 0x9000, scoped, tag = 'internal scratch']
  %s0 = inlined_call_operand.vmem [shape: bf16[8,12], index: 0, kind: input, shape index: {}]
  %s1 = inlined_call_operand.vmem [shape: f32[8,1], index: 1, kind: input, shape index: {}]
  %s2 = inlined_call_operand.vmem [shape: bf16[12,256], index: 2, kind: input, shape index: {}]
  %s3 = inlined_call_operand.vmem [shape: f32[8,256], index: 3, kind: output, shape index: {}]
  %s4 = sld [smem:[#allocation0]]
  $region86: #{lin_atom_to_amino.4} parent=0
    _
  %s6 = ssub.s32 1, %s4
  %s7 = scalar_select 0, %s6, %s4
  $region1: #{lin_atom_to_amino.4} parent=0
    #allocation2 [shape = 'u8[8192]{0}', space=vmem, size = 0x2000, scoped, tag = 'input window, operand 2']
    loop: start=0, step=1, limit=4
    $region2: #{lin_atom_to_amino.4} parent=1 // loop_pre_header
      _
    $region3: #{lin_atom_to_amino.4} parent=1 // loop_header
      %s9 = sphi 0, %s13
      %p10 = scmp.ge.s32.totalorder %s9, 4
      %s17 = sphi 0, %s17
      %s19 = sphi 0, %s17
      %s20 = sphi 0, %s19
      %s34 = sphi 0, %s20
      %s38 = sphi 0, %s38
      %s40 = sphi 0, %s38
      %s41 = sphi 0, %s40
      %s55 = sphi 0, %s41
      %s61 = sphi 0, %s63
      %s64 = sphi 0, %s61
      %s65 = sphi 0, %s64
      %s81 = sphi 0, %s65
      %s87 = sphi 0, %s89
      %s90 = sphi 0, %s87
      %s91 = sphi 0, %s90
      %s107 = sphi 0, %s91
    $region4: #{lin_atom_to_amino.4} parent=1 // loop_header_branch
      %12 = sbr.rel (%p10) target = $region8
    $region5: #{lin_atom_to_amino.4} parent=1 // loop_body
      %s14 = ssub.s32 %s9, 1
      %s15 = ssub.s32 %s9, 2
      %s16 = sadd.s32 %s9, 1
      %s18 = sadd.s32 %s17, 1
      %p21 = scmp.eq.s32.totalorder %s9, 1
      %p22 = scmp.ne.s32.totalorder %s17, %s19
      %p23 = scmp.eq.s32.totalorder %s9, 0
      %p24 = por %p22, %p23
      %p25 = scmp.ne.s32.totalorder %s17, %s19
      %p26 = scmp.eq.s32.totalorder %s14, 1
      %p27 = por %p25, %p26
      %p28 = scmp.ne.s32.totalorder %s19, %s20
      %p29 = scmp.eq.s32.totalorder %s14, 0
      %p30 = por %p28, %p29
      %p31 = scmp.ne.s32.totalorder %s19, %s20
      %p32 = scmp.eq.s32.totalorder %s15, 1
      %p33 = por %p31, %p32
      %p35 = scmp.ne.s32.totalorder %s20, %s34
      %p36 = scmp.eq.s32.totalorder %s15, 0
      %p37 = por %p35, %p36
      %s39 = sadd.s32 %s38, 1
      %p42 = scmp.eq.s32.totalorder %s9, 1
      %p43 = scmp.ne.s32.totalorder %s38, %s40
      %p44 = scmp.eq.s32.totalorder %s9, 0
      %p45 = por %p43, %p44
      %p46 = scmp.ne.s32.totalorder %s38, %s40
      %p47 = scmp.eq.s32.totalorder %s14, 1
      %p48 = por %p46, %p47
      %p49 = scmp.ne.s32.totalorder %s40, %s41
      %p50 = scmp.eq.s32.totalorder %s14, 0
      %p51 = por %p49, %p50
      %p52 = scmp.ne.s32.totalorder %s40, %s41
      %p53 = scmp.eq.s32.totalorder %s15, 1
      %p54 = por %p52, %p53
      %p56 = scmp.ne.s32.totalorder %s41, %s55
      %p57 = scmp.eq.s32.totalorder %s15, 0
      %p58 = por %p56, %p57
      %s59 = ssub.s32 %s9, %s16
      %p60 = scmp.eq.s32.totalorder %s59, 0
      %s62 = sadd.s32 %s61, 1
      %s63 = scalar_select %p60, %s61, %s62
      %p66 = pneg %p60
      %p67 = scmp.eq.s32.totalorder %s9, 1
      %p68 = por %p66, %p67
      %p69 = scmp.ne.s32.totalorder %s61, %s64
      %p70 = scmp.eq.s32.totalorder %s9, 0
      %p71 = por %p69, %p70
      %p72 = scmp.ne.s32.totalorder %s61, %s64
      %p73 = scmp.eq.s32.totalorder %s14, 1
      %p74 = por %p72, %p73
      %p75 = scmp.ne.s32.totalorder %s64, %s65
      %p76 = scmp.eq.s32.totalorder %s14, 0
      %p77 = por %p75, %p76
      %p78 = scmp.ne.s32.totalorder %s64, %s65
      %p79 = scmp.eq.s32.totalorder %s15, 1
      %p80 = por %p78, %p79
      %p82 = scmp.ne.s32.totalorder %s65, %s81
      %p83 = scmp.eq.s32.totalorder %s15, 0
      %p84 = por %p82, %p83
      %s85 = ssub.s32 %s9, %s16
      %p86 = scmp.eq.s32.totalorder %s85, 0
      %s88 = sadd.s32 %s87, 1
      %s89 = scalar_select %p86, %s87, %s88
      %p92 = pneg %p86
      %p93 = scmp.eq.s32.totalorder %s9, 1
      %p94 = por %p92, %p93
      %p95 = scmp.ne.s32.totalorder %s87, %s90
      %p96 = scmp.eq.s32.totalorder %s9, 0
      %p97 = por %p95, %p96
      %p98 = scmp.ne.s32.totalorder %s87, %s90
      %p99 = scmp.eq.s32.totalorder %s14, 1
      %p100 = por %p98, %p99
      %p101 = scmp.ne.s32.totalorder %s90, %s91
      %p102 = scmp.eq.s32.totalorder %s14, 0
      %p103 = por %p101, %p102
      %p104 = scmp.ne.s32.totalorder %s90, %s91
      %p105 = scmp.eq.s32.totalorder %s15, 1
      %p106 = por %p104, %p105
      %p108 = scmp.ne.s32.totalorder %s91, %s107
      %p109 = scmp.eq.s32.totalorder %s15, 0
      %p110 = por %p108, %p109
      %p111 = scmp.le.s32.totalorder 1, %s9
      %p112 = scmp.lt.s32.totalorder %s9, 3
      %p113 = pnand %p111, %p112
      %p114 = pneg %p113
      // Predicated region
      $region9: #{lin_atom_to_amino.4} parent=5 // pred_check
        _
      $region10: #{lin_atom_to_amino.4} parent=5 // pred_check_branch
        %116 = sbr.rel (%p113) target = $region12
      $region11: #{lin_atom_to_amino.4} parent=5 // pred_region
        %s117 = ssub.s32 %s9, 1
        // Predicated region
        $region13: #{lin_atom_to_amino.4} parent=11 // pred_check
          %p118 = pneg %p30
        $region14: #{lin_atom_to_amino.4} parent=11 // pred_check_branch
          %120 = sbr.rel (%p118) target = $region16
        $region15: #{lin_atom_to_amino.4} parent=11 // pred_region
          _
        $region16: #{lin_atom_to_amino.4} parent=11 // pred_fallthru
          _
        // Predicated region
        $region17: #{lin_atom_to_amino.4} parent=11 // pred_check
          %p121 = pneg %p51
        $region18: #{lin_atom_to_amino.4} parent=11 // pred_check_branch
          %123 = sbr.rel (%p121) target = $region20
        $region19: #{lin_atom_to_amino.4} parent=11 // pred_region
          _
        $region20: #{lin_atom_to_amino.4} parent=11 // pred_fallthru
          _
      $region12: #{lin_atom_to_amino.4} parent=5 // pred_fallthru
        _
      %p124 = scmp.lt.s32.totalorder %s9, 2
      // Predicated region
      $region21: #{lin_atom_to_amino.4} parent=5 // pred_check
        %p125 = pneg %p124
      $region22: #{lin_atom_to_amino.4} parent=5 // pred_check_branch
        %127 = sbr.rel (%p125) target = $region24
      $region23: #{lin_atom_to_amino.4} parent=5 // pred_region
        // Predicated region
        $region25: #{lin_atom_to_amino.4} parent=23 // pred_check
          %p128 = pneg %p71
        $region26: #{lin_atom_to_amino.4} parent=23 // pred_check_branch
          %130 = sbr.rel (%p128) target = $region28
        $region27: #{lin_atom_to_amino.4} parent=23 // pred_region
          %s131 = sand.u32 %s61, 1
          %s132 = sand.u32 %s61, 1
          %s133 = smul.addr %s132, 8
          %s134 = scalar_lea.vmem [#allocation2], %s133
          %s135 = smul.addr %s9, 4
          %s136 = scalar_lea.vmem %s2, %s135
          // Predicated region
          $region29: #{lin_atom_to_amino.4} parent=27 // pred_check
            _
          $region30: #{lin_atom_to_amino.4} parent=27 // pred_check_branch
            %138 = sbr.rel (0) target = $region32
          $region31: #{lin_atom_to_amino.4} parent=27 // pred_region
            // Predicated region
            $region33: #{lin_atom_to_amino.4} parent=31 // pred_check
              _
            $region34: #{lin_atom_to_amino.4} parent=31 // pred_check_branch
              %140 = sbr.rel target = $region36
            $region35: #{lin_atom_to_amino.4} parent=31 // pred_region
              // Predicated region
              $region48: #{lin_atom_to_amino.4} parent=35 // pred_check
                _
              $region49: #{lin_atom_to_amino.4} parent=35 // pred_check_branch
                %158 = sbr.rel (0) target = $region51
              $region50: #{lin_atom_to_amino.4} parent=35 // pred_region
                loop: start=0, step=1, limit=1
                $region52: #{lin_atom_to_amino.4} parent=50 // loop_pre_header
                  _
                $region53: #{lin_atom_to_amino.4} parent=50 // loop_header
                  %s160 = sphi 0, %s164
                  %p161 = scmp.ge.s32.totalorder %s160, 1
                  %s165 = sphi %s136, %s136
                  %s166 = sphi %s134, %s134
                $region54: #{lin_atom_to_amino.4} parent=50 // loop_header_branch
                  %163 = sbr.rel (%p161) target = $region58
                $region55: #{lin_atom_to_amino.4} parent=50 // loop_body
                  _
                $region56: #{lin_atom_to_amino.4} parent=50 // loop_footer
                  %s164 = sadd.s32 1, %s160
                $region57: #{lin_atom_to_amino.4} parent=50 // loop_footer_branch
                  %159 = sbr.rel target = $region53
                $region58: #{lin_atom_to_amino.4} parent=50 // loop_exit
                  _
                %s168 = ssub.s32 16, 1
                loop: start=0, step=1, limit=1
                $region59: #{lin_atom_to_amino.4} parent=50 // loop_pre_header
                  _
                $region60: #{lin_atom_to_amino.4} parent=50 // loop_header
                  %s170 = sphi 0, %s174
                  %p171 = scmp.ge.s32.totalorder %s170, 1
                  %s175 = sphi %s136, %s136
                  %s176 = sphi %s134, %s134
                $region61: #{lin_atom_to_amino.4} parent=50 // loop_header_branch
                  %173 = sbr.rel (%p171) target = $region65
                $region62: #{lin_atom_to_amino.4} parent=50 // loop_body
                  %v177 = vld [vmem:[%s175] sm:%s168]
                  %178 = vst [vmem:[%s176] sm:%s168] %v177
                  %v179 = vld [vmem:[%s175 + $0x8] sm:%s168]
                  %180 = vst [vmem:[%s176 + $0x4] sm:%s168] %v179
                $region63: #{lin_atom_to_amino.4} parent=50 // loop_footer
                  %s174 = sadd.s32 1, %s170
                $region64: #{lin_atom_to_amino.4} parent=50 // loop_footer_branch
                  %169 = sbr.rel target = $region60
                $region65: #{lin_atom_to_amino.4} parent=50 // loop_exit
                  _
              $region51: #{lin_atom_to_amino.4} parent=35 // pred_fallthru
                _
            $region36: #{lin_atom_to_amino.4} parent=31 // pred_fallthru
              _
            // Predicated region
            $region37: #{lin_atom_to_amino.4} parent=31 // pred_check
              _
            $region38: #{lin_atom_to_amino.4} parent=31 // pred_check_branch
              %142 = sbr.rel (0) target = $region40
            $region39: #{lin_atom_to_amino.4} parent=31 // pred_region
              %s144 = ssub.s32 16, 1
              loop: start=0, step=1, limit=1
              $region41: #{lin_atom_to_amino.4} parent=39 // loop_pre_header
                _
              $region42: #{lin_atom_to_amino.4} parent=39 // loop_header
                %s146 = sphi 0, %s150
                %p147 = scmp.ge.s32.totalorder %s146, 1
                %s151 = sphi %s136, %s136
                %s152 = sphi %s134, %s134
              $region43: #{lin_atom_to_amino.4} parent=39 // loop_header_branch
                %149 = sbr.rel (%p147) target = $region47
              $region44: #{lin_atom_to_amino.4} parent=39 // loop_body
                %v153 = vld [vmem:[%s151] sm:%s144]
                %154 = vst [vmem:[%s152] sm:%s144] %v153
                %v155 = vld [vmem:[%s151 + $0x8] sm:%s144]
                %156 = vst [vmem:[%s152 + $0x4] sm:%s144] %v155
              $region45: #{lin_atom_to_amino.4} parent=39 // loop_footer
                %s150 = sadd.s32 1, %s146
              $region46: #{lin_atom_to_amino.4} parent=39 // loop_footer_branch
                %145 = sbr.rel target = $region42
              $region47: #{lin_atom_to_amino.4} parent=39 // loop_exit
                _
            $region40: #{lin_atom_to_amino.4} parent=31 // pred_fallthru
              _
          $region32: #{lin_atom_to_amino.4} parent=27 // pred_fallthru
            _
          %181 = vnop
        $region28: #{lin_atom_to_amino.4} parent=23 // pred_fallthru
          _
      $region24: #{lin_atom_to_amino.4} parent=5 // pred_fallthru
        _
      %p182 = scmp.le.s32.totalorder 1, %s9
      %p183 = scmp.lt.s32.totalorder %s9, 3
      %p184 = pnand %p182, %p183
      %p185 = pneg %p184
      // Predicated region
      $region66: #{lin_atom_to_amino.4} parent=5 // pred_check
        _
      $region67: #{lin_atom_to_amino.4} parent=5 // pred_check_branch
        %187 = sbr.rel (%p184) target = $region69
      $region68: #{lin_atom_to_amino.4} parent=5 // pred_region
        %s188 = ssub.s32 %s9, 1
        %s189 = sand.u32 %s64, 1
        %s190 = sand.u32 %s64, 1
        %s191 = smul.addr %s190, 8
        %s192 = scalar_lea.vmem [#allocation2], %s191
        // Predicated region
        $region70: #{lin_atom_to_amino.4} parent=68 // pred_check
          %p193 = pneg %p77
        $region71: #{lin_atom_to_amino.4} parent=68 // pred_check_branch
          %195 = sbr.rel (%p193) target = $region73
        $region72: #{lin_atom_to_amino.4} parent=68 // pred_region
          _
        $region73: #{lin_atom_to_amino.4} parent=68 // pred_fallthru
          _
        %p196 = pneg %p30
        %p197 = pneg %p27
        %p198 = pneg %p51
        %p199 = pneg %p48
        %s200 = sand.u32 %s64, 1
        %s201 = sand.u32 %s64, 1
        %s202 = smul.addr %s201, 8
        %s203 = scalar_lea.vmem [#allocation2], %s202
        %p204 = pneg %p77
        %p205 = pneg %p74
        %p206 = pneg %p103
        %p207 = pneg %p100
        %p208 = scmp.lt.s32.totalorder %s14, 1
        %s209 = scalar_select %p208, %s14, 1
        %s210 = smul.addr %s209, 8
        %s211 = scalar_lea.vmem %s3, %s210
        %p212 = scmp.lt.s32.totalorder %s14, 1
        %s213 = scalar_select %p212, %s14, 1
        %s214 = smul.addr %s213, 8
        %s215 = scalar_lea.vmem %s3, %s214
        %v217 = vld [vmem:[%s0] sm:$0xf]
        %v218 = vld [vmem:[%s192] sm:$0xf]
        %v219 = vld [vmem:[%s192 + $0x4] sm:$0x3]
        %v220 = vld [vmem:[%s1] sm:$0xff]
        %222 = vset.pattern.permute.xlu0 0
        %223 = vperm.xlu0 %222, %v220
        %v224 = vpop.permute.xlu0 %223
        %v228 = vunpack.c.l.b16 %v218
        %v229 = vunpack.c.l.b16 %v219
        %v230 = vpack.c.b16 %v229, %v228
        %vm231 = vcmask 97280
        %v233 = vsel %vm231, %v217, 0
        %vm235 = vcmask 1045504
        %v237 = vsel %vm235, %v230, 0
        %239 = vmatpush.bf16.msra.mxu0 0
        %240 = vmatpush.bf16.msra.mxu0 0
        %241 = vmatpush.bf16.msra.mxu0 0
        %242 = vmatpush.bf16.msra.mxu0 0
        %243 = vmatpush.bf16.msra.mxu0 0
        %244 = vmatpush.bf16.msra.mxu0 0
        %245 = vmatpush.bf16.msra.mxu0 0
        %246 = vmatpush.bf16.msra.mxu0 %v237
        %247 = vmatmul.bf16.gmra.mxu0 %v233
        %v248 = vpop.f32.mrf.mxu0
        %v249 = vadd.f32 %v224, %v248
        %v250 = vpop.f32.mrf.mxu0
        %251 = vdwg.mxu0
        %252 = vst [vmem:[%s215] sm:$0xff] %v249
        %p253 = scmp.lt.s32.totalorder %s14, 1
        %s254 = scalar_select %p253, %s14, 1
        %s255 = smul.addr %s254, 8
        %s256 = scalar_lea.vmem %s3, %s255
        // Predicated region
        $region74: #{lin_atom_to_amino.4} parent=68 // pred_check
          %p257 = pneg %p100
        $region75: #{lin_atom_to_amino.4} parent=68 // pred_check_branch
          %259 = sbr.rel (%p257) target = $region77
        $region76: #{lin_atom_to_amino.4} parent=68 // pred_region
          _
        $region77: #{lin_atom_to_amino.4} parent=68 // pred_fallthru
          _
      $region69: #{lin_atom_to_amino.4} parent=5 // pred_fallthru
        _
      %p260 = scmp.le.s32.totalorder 2, %s9
      // Predicated region
      $region78: #{lin_atom_to_amino.4} parent=5 // pred_check
        %p261 = pneg %p260
      $region79: #{lin_atom_to_amino.4} parent=5 // pred_check_branch
        %263 = sbr.rel (%p261) target = $region81
      $region80: #{lin_atom_to_amino.4} parent=5 // pred_region
        %s264 = ssub.s32 %s9, 2
        // Predicated region
        $region82: #{lin_atom_to_amino.4} parent=80 // pred_check
          %p265 = pneg %p106
        $region83: #{lin_atom_to_amino.4} parent=80 // pred_check_branch
          %267 = sbr.rel (%p265) target = $region85
        $region84: #{lin_atom_to_amino.4} parent=80 // pred_region
          %p268 = scmp.lt.s32.totalorder %s15, 1
          %s269 = scalar_select %p268, %s15, 1
          %s270 = smul.addr %s269, 8
          %s271 = scalar_lea.vmem %s3, %s270
        $region85: #{lin_atom_to_amino.4} parent=80 // pred_fallthru
          _
      $region81: #{lin_atom_to_amino.4} parent=5 // pred_fallthru
        _
    $region6: #{lin_atom_to_amino.4} parent=1 // loop_footer
      %s13 = sadd.s32 1, %s9
    $region7: #{lin_atom_to_amino.4} parent=1 // loop_footer_branch
      %8 = sbr.rel target = $region3
    $region8: #{lin_atom_to_amino.4} parent=1 // loop_exit
      _

// kernel: lin_atom_to_amino.5
$region0: #{lin_atom_to_amino.5}
  #allocation0 [shape = 'u32[]', space=smem, size = 0x4, offset = 0x4, fixed_abs, tag = 'smem constant byte address 0x4 - core index']
  #allocation1 [shape = 'u32[72,128]{1,0:T(1,128)}', space=vmem, size = 0x9000, scoped, tag = 'internal scratch']
  %s0 = inlined_call_operand.vmem [shape: bf16[8,28], index: 0, kind: input, shape index: {}]
  %s1 = inlined_call_operand.vmem [shape: f32[8,1], index: 1, kind: input, shape index: {}]
  %s2 = inlined_call_operand.vmem [shape: bf16[28,256], index: 2, kind: input, shape index: {}]
  %s3 = inlined_call_operand.vmem [shape: f32[8,256], index: 3, kind: output, shape index: {}]
  %s4 = sld [smem:[#allocation0]]
  $region86: #{lin_atom_to_amino.5} parent=0
    _
  %s6 = ssub.s32 1, %s4
  %s7 = scalar_select 0, %s6, %s4
  $region1: #{lin_atom_to_amino.5} parent=0
    #allocation2 [shape = 'u8[16384]{0}', space=vmem, size = 0x4000, scoped, tag = 'input window, operand 2']
    loop: start=0, step=1, limit=4
    $region2: #{lin_atom_to_amino.5} parent=1 // loop_pre_header
      _
    $region3: #{lin_atom_to_amino.5} parent=1 // loop_header
      %s9 = sphi 0, %s13
      %p10 = scmp.ge.s32.totalorder %s9, 4
      %s17 = sphi 0, %s17
      %s19 = sphi 0, %s17
      %s20 = sphi 0, %s19
      %s34 = sphi 0, %s20
      %s38 = sphi 0, %s38
      %s40 = sphi 0, %s38
      %s41 = sphi 0, %s40
      %s55 = sphi 0, %s41
      %s61 = sphi 0, %s63
      %s64 = sphi 0, %s61
      %s65 = sphi 0, %s64
      %s81 = sphi 0, %s65
      %s87 = sphi 0, %s89
      %s90 = sphi 0, %s87
      %s91 = sphi 0, %s90
      %s107 = sphi 0, %s91
    $region4: #{lin_atom_to_amino.5} parent=1 // loop_header_branch
      %12 = sbr.rel (%p10) target = $region8
    $region5: #{lin_atom_to_amino.5} parent=1 // loop_body
      %s14 = ssub.s32 %s9, 1
      %s15 = ssub.s32 %s9, 2
      %s16 = sadd.s32 %s9, 1
      %s18 = sadd.s32 %s17, 1
      %p21 = scmp.eq.s32.totalorder %s9, 1
      %p22 = scmp.ne.s32.totalorder %s17, %s19
      %p23 = scmp.eq.s32.totalorder %s9, 0
      %p24 = por %p22, %p23
      %p25 = scmp.ne.s32.totalorder %s17, %s19
      %p26 = scmp.eq.s32.totalorder %s14, 1
      %p27 = por %p25, %p26
      %p28 = scmp.ne.s32.totalorder %s19, %s20
      %p29 = scmp.eq.s32.totalorder %s14, 0
      %p30 = por %p28, %p29
      %p31 = scmp.ne.s32.totalorder %s19, %s20
      %p32 = scmp.eq.s32.totalorder %s15, 1
      %p33 = por %p31, %p32
      %p35 = scmp.ne.s32.totalorder %s20, %s34
      %p36 = scmp.eq.s32.totalorder %s15, 0
      %p37 = por %p35, %p36
      %s39 = sadd.s32 %s38, 1
      %p42 = scmp.eq.s32.totalorder %s9, 1
      %p43 = scmp.ne.s32.totalorder %s38, %s40
      %p44 = scmp.eq.s32.totalorder %s9, 0
      %p45 = por %p43, %p44
      %p46 = scmp.ne.s32.totalorder %s38, %s40
      %p47 = scmp.eq.s32.totalorder %s14, 1
      %p48 = por %p46, %p47
      %p49 = scmp.ne.s32.totalorder %s40, %s41
      %p50 = scmp.eq.s32.totalorder %s14, 0
      %p51 = por %p49, %p50
      %p52 = scmp.ne.s32.totalorder %s40, %s41
      %p53 = scmp.eq.s32.totalorder %s15, 1
      %p54 = por %p52, %p53
      %p56 = scmp.ne.s32.totalorder %s41, %s55
      %p57 = scmp.eq.s32.totalorder %s15, 0
      %p58 = por %p56, %p57
      %s59 = ssub.s32 %s9, %s16
      %p60 = scmp.eq.s32.totalorder %s59, 0
      %s62 = sadd.s32 %s61, 1
      %s63 = scalar_select %p60, %s61, %s62
      %p66 = pneg %p60
      %p67 = scmp.eq.s32.totalorder %s9, 1
      %p68 = por %p66, %p67
      %p69 = scmp.ne.s32.totalorder %s61, %s64
      %p70 = scmp.eq.s32.totalorder %s9, 0
      %p71 = por %p69, %p70
      %p72 = scmp.ne.s32.totalorder %s61, %s64
      %p73 = scmp.eq.s32.totalorder %s14, 1
      %p74 = por %p72, %p73
      %p75 = scmp.ne.s32.totalorder %s64, %s65
      %p76 = scmp.eq.s32.totalorder %s14, 0
      %p77 = por %p75, %p76
      %p78 = scmp.ne.s32.totalorder %s64, %s65
      %p79 = scmp.eq.s32.totalorder %s15, 1
      %p80 = por %p78, %p79
      %p82 = scmp.ne.s32.totalorder %s65, %s81
      %p83 = scmp.eq.s32.totalorder %s15, 0
      %p84 = por %p82, %p83
      %s85 = ssub.s32 %s9, %s16
      %p86 = scmp.eq.s32.totalorder %s85, 0
      %s88 = sadd.s32 %s87, 1
      %s89 = scalar_select %p86, %s87, %s88
      %p92 = pneg %p86
      %p93 = scmp.eq.s32.totalorder %s9, 1
      %p94 = por %p92, %p93
      %p95 = scmp.ne.s32.totalorder %s87, %s90
      %p96 = scmp.eq.s32.totalorder %s9, 0
      %p97 = por %p95, %p96
      %p98 = scmp.ne.s32.totalorder %s87, %s90
      %p99 = scmp.eq.s32.totalorder %s14, 1
      %p100 = por %p98, %p99
      %p101 = scmp.ne.s32.totalorder %s90, %s91
      %p102 = scmp.eq.s32.totalorder %s14, 0
      %p103 = por %p101, %p102
      %p104 = scmp.ne.s32.totalorder %s90, %s91
      %p105 = scmp.eq.s32.totalorder %s15, 1
      %p106 = por %p104, %p105
      %p108 = scmp.ne.s32.totalorder %s91, %s107
      %p109 = scmp.eq.s32.totalorder %s15, 0
      %p110 = por %p108, %p109
      %p111 = scmp.le.s32.totalorder 1, %s9
      %p112 = scmp.lt.s32.totalorder %s9, 3
      %p113 = pnand %p111, %p112
      %p114 = pneg %p113
      // Predicated region
      $region9: #{lin_atom_to_amino.5} parent=5 // pred_check
        _
      $region10: #{lin_atom_to_amino.5} parent=5 // pred_check_branch
        %116 = sbr.rel (%p113) target = $region12
      $region11: #{lin_atom_to_amino.5} parent=5 // pred_region
        %s117 = ssub.s32 %s9, 1
        // Predicated region
        $region13: #{lin_atom_to_amino.5} parent=11 // pred_check
          %p118 = pneg %p30
        $region14: #{lin_atom_to_amino.5} parent=11 // pred_check_branch
          %120 = sbr.rel (%p118) target = $region16
        $region15: #{lin_atom_to_amino.5} parent=11 // pred_region
          _
        $region16: #{lin_atom_to_amino.5} parent=11 // pred_fallthru
          _
        // Predicated region
        $region17: #{lin_atom_to_amino.5} parent=11 // pred_check
          %p121 = pneg %p51
        $region18: #{lin_atom_to_amino.5} parent=11 // pred_check_branch
          %123 = sbr.rel (%p121) target = $region20
        $region19: #{lin_atom_to_amino.5} parent=11 // pred_region
          _
        $region20: #{lin_atom_to_amino.5} parent=11 // pred_fallthru
          _
      $region12: #{lin_atom_to_amino.5} parent=5 // pred_fallthru
        _
      %p124 = scmp.lt.s32.totalorder %s9, 2
      // Predicated region
      $region21: #{lin_atom_to_amino.5} parent=5 // pred_check
        %p125 = pneg %p124
      $region22: #{lin_atom_to_amino.5} parent=5 // pred_check_branch
        %127 = sbr.rel (%p125) target = $region24
      $region23: #{lin_atom_to_amino.5} parent=5 // pred_region
        // Predicated region
        $region25: #{lin_atom_to_amino.5} parent=23 // pred_check
          %p128 = pneg %p71
        $region26: #{lin_atom_to_amino.5} parent=23 // pred_check_branch
          %130 = sbr.rel (%p128) target = $region28
        $region27: #{lin_atom_to_amino.5} parent=23 // pred_region
          %s131 = sand.u32 %s61, 1
          %s132 = sand.u32 %s61, 1
          %s133 = smul.addr %s132, 16
          %s134 = scalar_lea.vmem [#allocation2], %s133
          %s135 = smul.addr %s9, 4
          %s136 = scalar_lea.vmem %s2, %s135
          // Predicated region
          $region29: #{lin_atom_to_amino.5} parent=27 // pred_check
            _
          $region30: #{lin_atom_to_amino.5} parent=27 // pred_check_branch
            %138 = sbr.rel (0) target = $region32
          $region31: #{lin_atom_to_amino.5} parent=27 // pred_region
            // Predicated region
            $region33: #{lin_atom_to_amino.5} parent=31 // pred_check
              _
            $region34: #{lin_atom_to_amino.5} parent=31 // pred_check_branch
              %140 = sbr.rel target = $region36
            $region35: #{lin_atom_to_amino.5} parent=31 // pred_region
              // Predicated region
              $region48: #{lin_atom_to_amino.5} parent=35 // pred_check
                _
              $region49: #{lin_atom_to_amino.5} parent=35 // pred_check_branch
                %162 = sbr.rel (0) target = $region51
              $region50: #{lin_atom_to_amino.5} parent=35 // pred_region
                loop: start=0, step=1, limit=1
                $region52: #{lin_atom_to_amino.5} parent=50 // loop_pre_header
                  _
                $region53: #{lin_atom_to_amino.5} parent=50 // loop_header
                  %s164 = sphi 0, %s168
                  %p165 = scmp.ge.s32.totalorder %s164, 1
                  %s169 = sphi %s136, %s136
                  %s170 = sphi %s134, %s134
                $region54: #{lin_atom_to_amino.5} parent=50 // loop_header_branch
                  %167 = sbr.rel (%p165) target = $region58
                $region55: #{lin_atom_to_amino.5} parent=50 // loop_body
                  _
                $region56: #{lin_atom_to_amino.5} parent=50 // loop_footer
                  %s168 = sadd.s32 1, %s164
                $region57: #{lin_atom_to_amino.5} parent=50 // loop_footer_branch
                  %163 = sbr.rel target = $region53
                $region58: #{lin_atom_to_amino.5} parent=50 // loop_exit
                  _
                %s172 = ssub.s32 16, 1
                loop: start=0, step=1, limit=1
                $region59: #{lin_atom_to_amino.5} parent=50 // loop_pre_header
                  _
                $region60: #{lin_atom_to_amino.5} parent=50 // loop_header
                  %s174 = sphi 0, %s178
                  %p175 = scmp.ge.s32.totalorder %s174, 1
                  %s179 = sphi %s136, %s136
                  %s180 = sphi %s134, %s134
                $region61: #{lin_atom_to_amino.5} parent=50 // loop_header_branch
                  %177 = sbr.rel (%p175) target = $region65
                $region62: #{lin_atom_to_amino.5} parent=50 // loop_body
                  %v181 = vld [vmem:[%s179] sm:%s172]
                  %182 = vst [vmem:[%s180] sm:%s172] %v181
                  %v183 = vld [vmem:[%s179 + $0x8] sm:%s172]
                  %184 = vst [vmem:[%s180 + $0x4] sm:%s172] %v183
                  %v185 = vld [vmem:[%s179 + $0x10] sm:%s172]
                  %186 = vst [vmem:[%s180 + $0x8] sm:%s172] %v185
                  %v187 = vld [vmem:[%s179 + $0x18] sm:%s172]
                  %188 = vst [vmem:[%s180 + $0xc] sm:%s172] %v187
                $region63: #{lin_atom_to_amino.5} parent=50 // loop_footer
                  %s178 = sadd.s32 1, %s174
                $region64: #{lin_atom_to_amino.5} parent=50 // loop_footer_branch
                  %173 = sbr.rel target = $region60
                $region65: #{lin_atom_to_amino.5} parent=50 // loop_exit
                  _
              $region51: #{lin_atom_to_amino.5} parent=35 // pred_fallthru
                _
            $region36: #{lin_atom_to_amino.5} parent=31 // pred_fallthru
              _
            // Predicated region
            $region37: #{lin_atom_to_amino.5} parent=31 // pred_check
              _
            $region38: #{lin_atom_to_amino.5} parent=31 // pred_check_branch
              %142 = sbr.rel (0) target = $region40
            $region39: #{lin_atom_to_amino.5} parent=31 // pred_region
              %s144 = ssub.s32 16, 1
              loop: start=0, step=1, limit=1
              $region41: #{lin_atom_to_amino.5} parent=39 // loop_pre_header
                _
              $region42: #{lin_atom_to_amino.5} parent=39 // loop_header
                %s146 = sphi 0, %s150
                %p147 = scmp.ge.s32.totalorder %s146, 1
                %s151 = sphi %s136, %s136
                %s152 = sphi %s134, %s134
              $region43: #{lin_atom_to_amino.5} parent=39 // loop_header_branch
                %149 = sbr.rel (%p147) target = $region47
              $region44: #{lin_atom_to_amino.5} parent=39 // loop_body
                %v153 = vld [vmem:[%s151] sm:%s144]
                %154 = vst [vmem:[%s152] sm:%s144] %v153
                %v155 = vld [vmem:[%s151 + $0x8] sm:%s144]
                %156 = vst [vmem:[%s152 + $0x4] sm:%s144] %v155
                %v157 = vld [vmem:[%s151 + $0x10] sm:%s144]
                %158 = vst [vmem:[%s152 + $0x8] sm:%s144] %v157
                %v159 = vld [vmem:[%s151 + $0x18] sm:%s144]
                %160 = vst [vmem:[%s152 + $0xc] sm:%s144] %v159
              $region45: #{lin_atom_to_amino.5} parent=39 // loop_footer
                %s150 = sadd.s32 1, %s146
              $region46: #{lin_atom_to_amino.5} parent=39 // loop_footer_branch
                %145 = sbr.rel target = $region42
              $region47: #{lin_atom_to_amino.5} parent=39 // loop_exit
                _
            $region40: #{lin_atom_to_amino.5} parent=31 // pred_fallthru
              _
          $region32: #{lin_atom_to_amino.5} parent=27 // pred_fallthru
            _
          %189 = vnop
        $region28: #{lin_atom_to_amino.5} parent=23 // pred_fallthru
          _
      $region24: #{lin_atom_to_amino.5} parent=5 // pred_fallthru
        _
      %p190 = scmp.le.s32.totalorder 1, %s9
      %p191 = scmp.lt.s32.totalorder %s9, 3
      %p192 = pnand %p190, %p191
      %p193 = pneg %p192
      // Predicated region
      $region66: #{lin_atom_to_amino.5} parent=5 // pred_check
        _
      $region67: #{lin_atom_to_amino.5} parent=5 // pred_check_branch
        %195 = sbr.rel (%p192) target = $region69
      $region68: #{lin_atom_to_amino.5} parent=5 // pred_region
        %s196 = ssub.s32 %s9, 1
        %s197 = sand.u32 %s64, 1
        %s198 = sand.u32 %s64, 1
        %s199 = smul.addr %s198, 16
        %s200 = scalar_lea.vmem [#allocation2], %s199
        // Predicated region
        $region70: #{lin_atom_to_amino.5} parent=68 // pred_check
          %p201 = pneg %p77
        $region71: #{lin_atom_to_amino.5} parent=68 // pred_check_branch
          %203 = sbr.rel (%p201) target = $region73
        $region72: #{lin_atom_to_amino.5} parent=68 // pred_region
          _
        $region73: #{lin_atom_to_amino.5} parent=68 // pred_fallthru
          _
        %p204 = pneg %p30
        %p205 = pneg %p27
        %p206 = pneg %p51
        %p207 = pneg %p48
        %s208 = sand.u32 %s64, 1
        %s209 = sand.u32 %s64, 1
        %s210 = smul.addr %s209, 16
        %s211 = scalar_lea.vmem [#allocation2], %s210
        %p212 = pneg %p77
        %p213 = pneg %p74
        %p214 = pneg %p103
        %p215 = pneg %p100
        %p216 = scmp.lt.s32.totalorder %s14, 1
        %s217 = scalar_select %p216, %s14, 1
        %s218 = smul.addr %s217, 8
        %s219 = scalar_lea.vmem %s3, %s218
        %p220 = scmp.lt.s32.totalorder %s14, 1
        %s221 = scalar_select %p220, %s14, 1
        %s222 = smul.addr %s221, 8
        %s223 = scalar_lea.vmem %s3, %s222
        %v225 = vld [vmem:[%s0] sm:$0xf]
        %v226 = vld [vmem:[%s200] sm:$0xf]
        %v227 = vld [vmem:[%s200 + $0x4] sm:$0xf]
        %v228 = vld [vmem:[%s200 + $0x8] sm:$0xf]
        %v229 = vld [vmem:[%s200 + $0xc] sm:$0x3]
        %v230 = vld [vmem:[%s1] sm:$0xff]
        %232 = vset.pattern.permute.xlu0 0
        %233 = vperm.xlu0 %232, %v230
        %v234 = vpop.permute.xlu0 %233
        %v240 = vunpack.c.l.b16 %v226
        %v241 = vunpack.c.l.b16 %v227
        %v242 = vunpack.c.l.b16 %v228
        %v243 = vunpack.c.l.b16 %v229
        %v244 = vpack.c.b16 %v241, %v240
        %v245 = vpack.c.b16 %v243, %v242
        %vm247 = vcmask 228352
        %v249 = vsel %vm247, %v225, 0
        %vm251 = vcmask 1045504
        %v253 = vsel %vm251, %v245, 0
        %255 = vmatpush.bf16.msra.mxu0 0
        %256 = vmatpush.bf16.msra.mxu0 0
        %257 = vmatpush.bf16.msra.mxu0 0
        %258 = vmatpush.bf16.msra.mxu0 0
        %259 = vmatpush.bf16.msra.mxu0 0
        %260 = vmatpush.bf16.msra.mxu0 0
        %261 = vmatpush.bf16.msra.mxu0 %v253
        %262 = vmatpush.bf16.msra.mxu0 %v244
        %263 = vmatmul.bf16.gmra.mxu0 %v249
        %v264 = vpop.f32.mrf.mxu0
        %v265 = vadd.f32 %v234, %v264
        %v266 = vpop.f32.mrf.mxu0
        %267 = vdwg.mxu0
        %268 = vst [vmem:[%s223] sm:$0xff] %v265
        %p269 = scmp.lt.s32.totalorder %s14, 1
        %s270 = scalar_select %p269, %s14, 1
        %s271 = smul.addr %s270, 8
        %s272 = scalar_lea.vmem %s3, %s271
        // Predicated region
        $region74: #{lin_atom_to_amino.5} parent=68 // pred_check
          %p273 = pneg %p100
        $region75: #{lin_atom_to_amino.5} parent=68 // pred_check_branch
          %275 = sbr.rel (%p273) target = $region77
        $region76: #{lin_atom_to_amino.5} parent=68 // pred_region
          _
        $region77: #{lin_atom_to_amino.5} parent=68 // pred_fallthru
          _
      $region69: #{lin_atom_to_amino.5} parent=5 // pred_fallthru
        _
      %p276 = scmp.le.s32.totalorder 2, %s9
      // Predicated region
      $region78: #{lin_atom_to_amino.5} parent=5 // pred_check
        %p277 = pneg %p276
      $region79: #{lin_atom_to_amino.5} parent=5 // pred_check_branch
        %279 = sbr.rel (%p277) target = $region81
      $region80: #{lin_atom_to_amino.5} parent=5 // pred_region
        %s280 = ssub.s32 %s9, 2
        // Predicated region
        $region82: #{lin_atom_to_amino.5} parent=80 // pred_check
          %p281 = pneg %p106
        $region83: #{lin_atom_to_amino.5} parent=80 // pred_check_branch
          %283 = sbr.rel (%p281) target = $region85
        $region84: #{lin_atom_to_amino.5} parent=80 // pred_region
          %p284 = scmp.lt.s32.totalorder %s15, 1
          %s285 = scalar_select %p284, %s15, 1
          %s286 = smul.addr %s285, 8
          %s287 = scalar_lea.vmem %s3, %s286
        $region85: #{lin_atom_to_amino.5} parent=80 // pred_fallthru
          _
      $region81: #{lin_atom_to_amino.5} parent=5 // pred_fallthru
        _
    $region6: #{lin_atom_to_amino.5} parent=1 // loop_footer
      %s13 = sadd.s32 1, %s9
    $region7: #{lin_atom_to_amino.5} parent=1 // loop_footer_branch
      %8 = sbr.rel target = $region3
    $region8: #{lin_atom_to_amino.5} parent=1 // loop_exit
      _

</llo_original>
